<compile_context>
chip_gen: v7x
topology: tpu7x:2x2x1
jax: 0.10.0
libtpu: 0.0.40
codegen_flags: <defaults>
</compile_context>

<pallas_src>
import math

import numpy as np

import jax
import jax.numpy as jnp
from jax.experimental import pallas as pl
from jax.experimental.pallas import tpu as pltpu


POOL_SIZES = (1, 2, 4)


def _adaptive_bins(dim, s):
    """PyTorch adaptive_avg_pool2d bin boundaries along one axis (static ints)."""
    return [((i * dim) // s, math.ceil(((i + 1) * dim) / s)) for i in range(s)]


def _round_up(x, m):
    return ((x + m - 1) // m) * m


# --------------------------------------------------------------------------- #
# Kernel: per-channel adaptive pooling + fc, both as MXU matmuls.
#   x_ref  : (TB, C, HW)   activation tile (input dtype)
#   pt_ref : (HW, KB)      adaptive-pool matrix P^T (f32), bin columns padded
#   w2_ref : (C, KB, TN)   bin-reordered fc weight (f32), zero-padded rows/cols
#   b_ref  : (1, TN)       fc bias (f32, padded)
#   o_ref  : (TB, TN)      logits tile
# --------------------------------------------------------------------------- #
def _sppool_cls_kernel(x_ref, pt_ref, w2_ref, b_ref, o_ref):
    n_chan = x_ref.shape[1]
    xv = x_ref[...]          # (TB, C, HW) -- single load, sliced per channel
    pt = pt_ref[...]         # (HW, KB)
    w2 = w2_ref[...]         # (C, KB, TN)

    acc = jnp.zeros(o_ref.shape, jnp.float32)
    for c in range(n_chan):  # static channel count -> unrolled at trace time
        # Stage 1: adaptive average pooling of channel c == one MXU matmul.
        pooled = jnp.dot(xv[:, c, :], pt,
                         preferred_element_type=jnp.float32)       # (TB, KB)
        # Stage 2: this channel's contribution to the fully connected layer.
        acc = acc + jnp.dot(pooled, w2[c],
                            preferred_element_type=jnp.float32)    # (TB, TN)

    o_ref[...] = (acc + b_ref[...]).astype(o_ref.dtype)


# --------------------------------------------------------------------------- #
# One-time (per weight set / feature-map size) host-side preparation.
# Hoisted out of the forward pass per the performance review.
# --------------------------------------------------------------------------- #
def make_sppool_cls_params(weight, bias, C, H, W, pool_sizes=POOL_SIZES):
    N, F = weight.shape
    nbins = sum(s * s for s in pool_sizes)
    assert F == C * nbins, "fc in_features must equal C * sum(s*s)"

    KB = _round_up(nbins, 128)     # padded bin count   (lane-aligned)
    Npad = _round_up(N, 128)       # padded class count (lane-dense stores)
    HW = H * W

    # P^T[p, k] = 1/area_k if pixel p lies in pooling bin k, else 0.
    pt = np.zeros((HW, KB), np.float32)
    k = 0
    for s in pool_sizes:
        hbins = _adaptive_bins(H, s)
        wbins = _adaptive_bins(W, s)
        for (h0, h1) in hbins:
            for (w0, w1) in wbins:
                inv_area = 1.0 / float((h1 - h0) * (w1 - w0))
                for h in range(h0, h1):
                    pt[h * W + w0:h * W + w1, k] = inv_area
                k += 1

    # Reorder fc weight so stage 2 consumes pooled bins directly:
    #   W2[c, koff_s + j, n] = weight[n, foff_s + c*s*s + j]
    wnp = np.asarray(weight, np.float32)
    w2 = np.zeros((C, KB, Npad), np.float32)
    koff, foff = 0, 0
    for s in pool_sizes:
        ss = s * s
        w_s = wnp[:, foff:foff + C * ss].reshape(N, C, ss)       # (N, C, ss)
        w2[:, koff:koff + ss, :N] = np.transpose(w_s, (1, 2, 0))  # (C, ss, N)
        koff += ss
        foff += C * ss

    bias_p = np.zeros((1, Npad), np.float32)
    bias_p[0, :N] = np.asarray(bias, np.float32)

    return {
        "pt": jnp.asarray(pt),          # (HW, KB)   f32
        "w2": jnp.asarray(w2),          # (C, KB, Npad) f32
        "bias": jnp.asarray(bias_p),    # (1, Npad)  f32
        "num_classes": N,
    }


# --------------------------------------------------------------------------- #
# Hot-path forward: one pallas_call, nothing else materialized per call.
# --------------------------------------------------------------------------- #
def sppool_cls_forward(x, params):
    pt, w2, bias_p = params["pt"], params["w2"], params["bias"]
    N = params["num_classes"]

    B, C, H, W = x.shape
    HW = H * W
    KB = pt.shape[1]
    Npad = w2.shape[2]
    assert pt.shape[0] == HW and w2.shape[0] == C

    # Batch tiling: keep the tile at the real batch size (memory-bound kernel).
    TB = min(B, 128)
    Bp = _round_up(B, TB)
    x3 = x.reshape(B, C, HW)                 # contiguous reshape: no copy
    if Bp != B:                              # not hit at these shapes
        x3 = jnp.pad(x3, ((0, Bp - B), (0, 0), (0, 0)))

    # Class tiling: bounds VMEM for large num_classes and, when Npad >= 256,
    # gives a >=2-block parallel axis for v7x's two TensorCores.
    if Npad % 512 == 0:
        TN = 512
    elif Npad % 256 == 0:
        TN = 256
    else:
        TN = 128

    grid = (Bp // TB, Npad // TN)

    out = pl.pallas_call(
        _sppool_cls_kernel,
        out_shape=jax.ShapeDtypeStruct((Bp, Npad), x.dtype),
        grid_spec=pltpu.PrefetchScalarGridSpec(
            num_scalar_prefetch=0,
            grid=grid,
            in_specs=[
                pl.BlockSpec((TB, C, HW), lambda i, j: (i, 0, 0)),   # activations
                pl.BlockSpec((HW, KB), lambda i, j: (0, 0)),         # pool matrix
                pl.BlockSpec((C, KB, TN), lambda i, j: (0, 0, j)),   # fc weight
                pl.BlockSpec((1, TN), lambda i, j: (0, j)),          # fc bias
            ],
            out_specs=pl.BlockSpec((TB, TN), lambda i, j: (i, j)),
        ),
        compiler_params=pltpu.CompilerParams(
            dimension_semantics=("parallel", "parallel")),
    )(x3, pt, w2, bias_p)

    return out[:B, :N]


# --------------------------------------------------------------------------- #
# Pure-JAX reference mirroring the PyTorch forward.
# --------------------------------------------------------------------------- #
def _reference(x, weight, bias, pool_sizes=POOL_SIZES):
    B, C, H, W = x.shape
    outs = []
    for s in pool_sizes:
        hbins = _adaptive_bins(H, s)
        wbins = _adaptive_bins(W, s)
        pool = jnp.stack(
            [jnp.stack([x[:, :, h0:h1, w0:w1].mean(axis=(2, 3))
                        for (w0, w1) in wbins], axis=-1)
             for (h0, h1) in hbins], axis=-2)    # (B, C, s, s)
        outs.append(pool.reshape(B, -1))
    feats = jnp.concatenate(outs, axis=1)
    return feats @ weight.T + bias


if __name__ == "__main__":
    B, C, H, W = 2, 4, 16, 16
    num_classes = 10
    in_features = C * sum(s * s for s in POOL_SIZES)   # 4 * 21 = 84

    key = jax.random.PRNGKey(0)
    kx, kw, kb = jax.random.split(key, 3)
    x = jax.random.normal(kx, (B, C, H, W), dtype=jnp.float32)
    bound = 1.0 / math.sqrt(in_features)
    weight = jax.random.uniform(kw, (num_classes, in_features),
                                minval=-bound, maxval=bound, dtype=jnp.float32)
    bias = jax.random.uniform(kb, (num_classes,),
                              minval=-bound, maxval=bound, dtype=jnp.float32)

    # One-time prep (hoisted out of the hot path), then the forward pass.
    params = make_sppool_cls_params(weight, bias, C, H, W)
    out = sppool_cls_forward(x, params)
    jax.block_until_ready(out)

    ref = _reference(x, weight, bias)
    assert out.shape == (B, num_classes)
    assert jnp.allclose(out, ref, rtol=2e-4, atol=1e-4), "mismatch vs reference"

    print("KERNEL_OK")
</pallas_src>

<mosaic_0001>
module attributes {stable_mosaic.version = 11 : i64} {
  func.func @_sppool_cls_kernel(%arg0: i32, %arg1: i32, %arg2: memref<2x4x256xf32, #tpu.memory_space<vmem>>, %arg3: memref<256x128xf32, #tpu.memory_space<vmem>>, %arg4: memref<4x128x128xf32, #tpu.memory_space<vmem>>, %arg5: memref<1x128xf32, #tpu.memory_space<vmem>>, %arg6: memref<2x128xf32, #tpu.memory_space<vmem>>) attributes {dimension_semantics = [#tpu.dimension_semantics<parallel>, #tpu.dimension_semantics<parallel>], iteration_bounds = array<i64: 1, 1>, scalar_prefetch = 0 : i64, scratch_operands = 0 : i64, tpu.core_type = #tpu.core_type<tc>, window_params = [{transform_indices = @transform_0, window_bounds = array<i64: 2, 4, 256>}, {pipeline_mode = #tpu.pipeline_mode<synchronous>, transform_indices = @transform_1, window_bounds = array<i64: 256, 128>}, {transform_indices = @transform_2, window_bounds = array<i64: 4, 128, 128>}, {transform_indices = @transform_3, window_bounds = array<i64: 1, 128>}, {transform_indices = @transform_4, window_bounds = array<i64: 2, 128>}]} {
    %c0 = arith.constant 0 : index
    %c0_0 = arith.constant 0 : index
    %c0_1 = arith.constant 0 : index
    %0 = vector.load %arg2[%c0, %c0_0, %c0_1] : memref<2x4x256xf32, #tpu.memory_space<vmem>>, vector<2x4x256xf32>
    %c0_2 = arith.constant 0 : index
    %c0_3 = arith.constant 0 : index
    %1 = vector.load %arg3[%c0_2, %c0_3] : memref<256x128xf32, #tpu.memory_space<vmem>>, vector<256x128xf32>
    %c0_4 = arith.constant 0 : index
    %c0_5 = arith.constant 0 : index
    %c0_6 = arith.constant 0 : index
    %2 = vector.load %arg4[%c0_4, %c0_5, %c0_6] : memref<4x128x128xf32, #tpu.memory_space<vmem>>, vector<4x128x128xf32>
    %cst = arith.constant 0.000000e+00 : f32
    %3 = vector.broadcast %cst : f32 to vector<2x128xf32>
    %4 = vector.extract_strided_slice %0 {offsets = [0, 0, 0], sizes = [2, 1, 256], strides = [1, 1, 1]} : vector<2x4x256xf32> to vector<2x1x256xf32>
    %5 = vector.shape_cast %4 : vector<2x1x256xf32> to vector<2x256xf32>
    %cst_7 = arith.constant dense<0.000000e+00> : vector<2x128xf32>
    %6 = tpu.matmul %5, %1, %cst_7 {dimension_numbers = #tpu.dot_dimension_numbers<[1], [0], [0], [1], [0, 0, 1, 1], [], []>} : vector<2x256xf32>, vector<256x128xf32>, vector<2x128xf32> -> vector<2x128xf32>
    %7 = vector.extract_strided_slice %2 {offsets = [0, 0, 0], sizes = [1, 128, 128], strides = [1, 1, 1]} : vector<4x128x128xf32> to vector<1x128x128xf32>
    %8 = vector.shape_cast %7 : vector<1x128x128xf32> to vector<128x128xf32>
    %cst_8 = arith.constant dense<0.000000e+00> : vector<2x128xf32>
    %9 = tpu.matmul %6, %8, %cst_8 {dimension_numbers = #tpu.dot_dimension_numbers<[1], [0], [0], [1], [0, 0, 1, 1], [], []>} : vector<2x128xf32>, vector<128x128xf32>, vector<2x128xf32> -> vector<2x128xf32>
    %10 = arith.addf %3, %9 : vector<2x128xf32>
    %11 = vector.extract_strided_slice %0 {offsets = [0, 1, 0], sizes = [2, 1, 256], strides = [1, 1, 1]} : vector<2x4x256xf32> to vector<2x1x256xf32>
    %12 = vector.shape_cast %11 : vector<2x1x256xf32> to vector<2x256xf32>
    %cst_9 = arith.constant dense<0.000000e+00> : vector<2x128xf32>
    %13 = tpu.matmul %12, %1, %cst_9 {dimension_numbers = #tpu.dot_dimension_numbers<[1], [0], [0], [1], [0, 0, 1, 1], [], []>} : vector<2x256xf32>, vector<256x128xf32>, vector<2x128xf32> -> vector<2x128xf32>
    %14 = vector.extract_strided_slice %2 {offsets = [1, 0, 0], sizes = [1, 128, 128], strides = [1, 1, 1]} : vector<4x128x128xf32> to vector<1x128x128xf32>
    %15 = vector.shape_cast %14 : vector<1x128x128xf32> to vector<128x128xf32>
    %cst_10 = arith.constant dense<0.000000e+00> : vector<2x128xf32>
    %16 = tpu.matmul %13, %15, %cst_10 {dimension_numbers = #tpu.dot_dimension_numbers<[1], [0], [0], [1], [0, 0, 1, 1], [], []>} : vector<2x128xf32>, vector<128x128xf32>, vector<2x128xf32> -> vector<2x128xf32>
    %17 = arith.addf %10, %16 : vector<2x128xf32>
    %18 = vector.extract_strided_slice %0 {offsets = [0, 2, 0], sizes = [2, 1, 256], strides = [1, 1, 1]} : vector<2x4x256xf32> to vector<2x1x256xf32>
    %19 = vector.shape_cast %18 : vector<2x1x256xf32> to vector<2x256xf32>
    %cst_11 = arith.constant dense<0.000000e+00> : vector<2x128xf32>
    %20 = tpu.matmul %19, %1, %cst_11 {dimension_numbers = #tpu.dot_dimension_numbers<[1], [0], [0], [1], [0, 0, 1, 1], [], []>} : vector<2x256xf32>, vector<256x128xf32>, vector<2x128xf32> -> vector<2x128xf32>
    %21 = vector.extract_strided_slice %2 {offsets = [2, 0, 0], sizes = [1, 128, 128], strides = [1, 1, 1]} : vector<4x128x128xf32> to vector<1x128x128xf32>
    %22 = vector.shape_cast %21 : vector<1x128x128xf32> to vector<128x128xf32>
    %cst_12 = arith.constant dense<0.000000e+00> : vector<2x128xf32>
    %23 = tpu.matmul %20, %22, %cst_12 {dimension_numbers = #tpu.dot_dimension_numbers<[1], [0], [0], [1], [0, 0, 1, 1], [], []>} : vector<2x128xf32>, vector<128x128xf32>, vector<2x128xf32> -> vector<2x128xf32>
    %24 = arith.addf %17, %23 : vector<2x128xf32>
    %25 = vector.extract_strided_slice %0 {offsets = [0, 3, 0], sizes = [2, 1, 256], strides = [1, 1, 1]} : vector<2x4x256xf32> to vector<2x1x256xf32>
    %26 = vector.shape_cast %25 : vector<2x1x256xf32> to vector<2x256xf32>
    %cst_13 = arith.constant dense<0.000000e+00> : vector<2x128xf32>
    %27 = tpu.matmul %26, %1, %cst_13 {dimension_numbers = #tpu.dot_dimension_numbers<[1], [0], [0], [1], [0, 0, 1, 1], [], []>} : vector<2x256xf32>, vector<256x128xf32>, vector<2x128xf32> -> vector<2x128xf32>
    %28 = vector.extract_strided_slice %2 {offsets = [3, 0, 0], sizes = [1, 128, 128], strides = [1, 1, 1]} : vector<4x128x128xf32> to vector<1x128x128xf32>
    %29 = vector.shape_cast %28 : vector<1x128x128xf32> to vector<128x128xf32>
    %cst_14 = arith.constant dense<0.000000e+00> : vector<2x128xf32>
    %30 = tpu.matmul %27, %29, %cst_14 {dimension_numbers = #tpu.dot_dimension_numbers<[1], [0], [0], [1], [0, 0, 1, 1], [], []>} : vector<2x128xf32>, vector<128x128xf32>, vector<2x128xf32> -> vector<2x128xf32>
    %31 = arith.addf %24, %30 : vector<2x128xf32>
    %c0_15 = arith.constant 0 : index
    %c0_16 = arith.constant 0 : index
    %32 = vector.load %arg5[%c0_15, %c0_16] : memref<1x128xf32, #tpu.memory_space<vmem>>, vector<1x128xf32>
    %33 = vector.broadcast %32 : vector<1x128xf32> to vector<2x128xf32>
    %34 = arith.addf %31, %33 : vector<2x128xf32>
    %c0_17 = arith.constant 0 : index
    %c0_18 = arith.constant 0 : index
    %35 = vector.load %arg6[%c0_17, %c0_18] : memref<2x128xf32, #tpu.memory_space<vmem>>, vector<2x128xf32>
    tpu.vector_store %arg6[%c0_17, %c0_18], %34 {strides = array<i32>} : memref<2x128xf32, #tpu.memory_space<vmem>>, vector<2x128xf32>,
    return
  }
  func.func @transform_0(%arg0: i32, %arg1: i32) -> (i32, i32, i32) {
    %c0_i32 = arith.constant 0 : i32
    %c0_i32_0 = arith.constant 0 : i32
    %c0_i32_1 = arith.constant 0 : i32
    return %arg0, %c0_i32, %c0_i32_0 : i32, i32, i32
  }
  func.func @transform_1(%arg0: i32, %arg1: i32) -> (i32, i32) {
    %c0_i32 = arith.constant 0 : i32
    %c0_i32_0 = arith.constant 0 : i32
    %c0_i32_1 = arith.constant 0 : i32
    return %c0_i32, %c0_i32_0 : i32, i32
  }
  func.func @transform_2(%arg0: i32, %arg1: i32) -> (i32, i32, i32) {
    %c0_i32 = arith.constant 0 : i32
    %c0_i32_0 = arith.constant 0 : i32
    %c0_i32_1 = arith.constant 0 : i32
    return %c0_i32, %c0_i32_0, %arg1 : i32, i32, i32
  }
  func.func @transform_3(%arg0: i32, %arg1: i32) -> (i32, i32) {
    %c0_i32 = arith.constant 0 : i32
    %c0_i32_0 = arith.constant 0 : i32
    return %c0_i32, %arg1 : i32, i32
  }
  func.func @transform_4(%arg0: i32, %arg1: i32) -> (i32, i32) {
    %c0_i32 = arith.constant 0 : i32
    return %arg0, %arg1 : i32, i32
  }
}

</mosaic_0001>

<llo_original>
// kernel: tpu_custom_call.1
$region0: #{tpu_custom_call.1}
  #allocation0 [shape = 'u32[]', space=smem, size = 0x4, offset = 0x4, fixed_abs, tag = 'smem constant byte address 0x4 - core index']
  #allocation1 [shape = 'u32[144,128]{1,0:T(1,128)}', space=vmem, size = 0x12000, scoped, tag = 'internal scratch']
  %s0 = inlined_call_operand.hbm [shape: f32[2,4,256], index: 0, kind: input, shape index: {}]
  %s1 = inlined_call_operand.hbm [shape: f32[256,128], index: 1, kind: input, shape index: {}]
  %s2 = inlined_call_operand.hbm [shape: f32[4,128,128], index: 2, kind: input, shape index: {}]
  %s3 = inlined_call_operand.vmem [shape: f32[1,128], index: 3, kind: input, shape index: {}]
  %s4 = inlined_call_operand.hbm [shape: f32[2,128], index: 4, kind: output, shape index: {}]
  %s5 = sld [smem:[#allocation0]]
  $region38: #{tpu_custom_call.1} parent=0
    _
  %s7 = ssub.s32 1, %s5
  %s8 = scalar_select 0, %s7, %s5
  $region1: #{tpu_custom_call.1} parent=0
    #allocation2 [shape = 'u8[8192]{0}', space=vmem, size = 0x2000, scoped, tag = 'input window, operand 0, single buffered']
    #allocation3 [shape = 's32[1]{0}', space=sflag, size = 0x4, scoped, tag = 'scoped memory for tpu_custom_call.1']
    #allocation4 [shape = 's32[1]{0}', space=sflag, size = 0x4, scoped, tag = 'scoped memory for tpu_custom_call.1']
    #allocation5 [shape = 'u8[131072]{0}', space=vmem, size = 0x20000, scoped, tag = 'input window, operand 1, single buffered']
    #allocation6 [shape = 's32[1]{0}', space=sflag, size = 0x4, scoped, tag = 'scoped memory for tpu_custom_call.1']
    #allocation7 [shape = 'u8[262144]{0}', space=vmem, size = 0x40000, scoped, tag = 'input window, operand 2, single buffered']
    #allocation8 [shape = 'u8[1024]{0}', space=vmem, size = 0x400, scoped, tag = 'output window, operand 0, single buffered']
    %9 = vsyncpa [#allocation3], 0
    %10 = vsyncpa [#allocation6], 0
    %11 = vsyncpa [#allocation4], 0
    // Predicated region
    $region2: #{tpu_custom_call.1} parent=1 // pred_check
      _
    $region3: #{tpu_custom_call.1} parent=1 // pred_check_branch
      %13 = sbr.rel (0) target = $region5
    $region4: #{tpu_custom_call.1} parent=1 // pred_region
      %s15 = ssub.s32 256, 256
      %16 = vsyncadd [#allocation3], %s15
      %s17 = sshll.u32 [#allocation2], 4
      %s18 = int_to_ptr.vmem [resolvable:$true] %s17
      %23 = dma.hbm_to_vmem [thread:$0]  %s0, 256, %s18, [#allocation3], 128, 128, 8
    $region5: #{tpu_custom_call.1} parent=1 // pred_fallthru
      _
    // Predicated region
    $region6: #{tpu_custom_call.1} parent=1 // pred_check
      _
    $region7: #{tpu_custom_call.1} parent=1 // pred_check_branch
      %25 = sbr.rel (0) target = $region9
    $region8: #{tpu_custom_call.1} parent=1 // pred_region
      %s27 = ssub.s32 4096, 4096
      %28 = vsyncadd [#allocation6], %s27
      %s29 = sshll.u32 [#allocation5], 4
      %s30 = int_to_ptr.vmem [resolvable:$true] %s29
      %35 = dma.hbm_to_vmem [thread:$0]  %s1, 4096, %s30, [#allocation6], 128, 128, 8
    $region9: #{tpu_custom_call.1} parent=1 // pred_fallthru
      _
    // Predicated region
    $region10: #{tpu_custom_call.1} parent=1 // pred_check
      _
    $region11: #{tpu_custom_call.1} parent=1 // pred_check_branch
      %37 = sbr.rel (0) target = $region13
    $region12: #{tpu_custom_call.1} parent=1 // pred_region
      %s39 = ssub.s32 8192, 8192
      %40 = vsyncadd [#allocation6], %s39
      %s41 = sshll.u32 [#allocation7], 4
      %s42 = int_to_ptr.vmem [resolvable:$true] %s41
      %47 = dma.hbm_to_vmem [thread:$0]  %s2, 8192, %s42, [#allocation6], 128, 128, 8
    $region13: #{tpu_custom_call.1} parent=1 // pred_fallthru
      _
    // Predicated region
    $region14: #{tpu_custom_call.1} parent=1 // pred_check
      _
    $region15: #{tpu_custom_call.1} parent=1 // pred_check_branch
      %49 = sbr.rel (0) target = $region17
    $region16: #{tpu_custom_call.1} parent=1 // pred_region
      _
    $region17: #{tpu_custom_call.1} parent=1 // pred_fallthru
      _
    // Predicated region
    $region18: #{tpu_custom_call.1} parent=1 // pred_check
      _
    $region19: #{tpu_custom_call.1} parent=1 // pred_check_branch
      %51 = sbr.rel (0) target = $region21
    $region20: #{tpu_custom_call.1} parent=1 // pred_region
      %52 = dma.done [#allocation3], 256
    $region21: #{tpu_custom_call.1} parent=1 // pred_fallthru
      _
    // Predicated region
    $region22: #{tpu_custom_call.1} parent=1 // pred_check
      _
    $region23: #{tpu_custom_call.1} parent=1 // pred_check_branch
      %54 = sbr.rel (0) target = $region25
    $region24: #{tpu_custom_call.1} parent=1 // pred_region
      %55 = dma.done [#allocation6], 4096
    $region25: #{tpu_custom_call.1} parent=1 // pred_fallthru
      _
    // Predicated region
    $region26: #{tpu_custom_call.1} parent=1 // pred_check
      _
    $region27: #{tpu_custom_call.1} parent=1 // pred_check_branch
      %57 = sbr.rel (0) target = $region29
    $region28: #{tpu_custom_call.1} parent=1 // pred_region
      %58 = dma.done [#allocation6], 8192
    $region29: #{tpu_custom_call.1} parent=1 // pred_fallthru
      _
    %v59 = vld [vmem:[#allocation2] sm:$0xff]
    %v60 = vld [vmem:[#allocation2 + $0x8] sm:$0xff]
    %v61 = vld [vmem:[#allocation5] sm:$0xff]
    %v62 = vld [vmem:[#allocation5 + $0x8] sm:$0xff]
    %v63 = vld [vmem:[#allocation5 + $0x10] sm:$0xff]
    %v64 = vld [vmem:[#allocation5 + $0x18] sm:$0xff]
    %v65 = vld [vmem:[#allocation5 + $0x20] sm:$0xff]
    %v66 = vld [vmem:[#allocation5 + $0x28] sm:$0xff]
    %v67 = vld [vmem:[#allocation5 + $0x30] sm:$0xff]
    %v68 = vld [vmem:[#allocation5 + $0x38] sm:$0xff]
    %v69 = vld [vmem:[#allocation5 + $0x40] sm:$0xff]
    %v70 = vld [vmem:[#allocation5 + $0x48] sm:$0xff]
    %v71 = vld [vmem:[#allocation5 + $0x50] sm:$0xff]
    %v72 = vld [vmem:[#allocation5 + $0x58] sm:$0xff]
    %v73 = vld [vmem:[#allocation5 + $0x60] sm:$0xff]
    %v74 = vld [vmem:[#allocation5 + $0x68] sm:$0xff]
    %v75 = vld [vmem:[#allocation5 + $0x70] sm:$0xff]
    %v76 = vld [vmem:[#allocation5 + $0x78] sm:$0xff]
    %v77 = vld [vmem:[#allocation5 + $0x80] sm:$0xff]
    %v78 = vld [vmem:[#allocation5 + $0x88] sm:$0xff]
    %v79 = vld [vmem:[#allocation5 + $0x90] sm:$0xff]
    %v80 = vld [vmem:[#allocation5 + $0x98] sm:$0xff]
    %v81 = vld [vmem:[#allocation5 + $0xa0] sm:$0xff]
    %v82 = vld [vmem:[#allocation5 + $0xa8] sm:$0xff]
    %v83 = vld [vmem:[#allocation5 + $0xb0] sm:$0xff]
    %v84 = vld [vmem:[#allocation5 + $0xb8] sm:$0xff]
    %v85 = vld [vmem:[#allocation5 + $0xc0] sm:$0xff]
    %v86 = vld [vmem:[#allocation5 + $0xc8] sm:$0xff]
    %v87 = vld [vmem:[#allocation5 + $0xd0] sm:$0xff]
    %v88 = vld [vmem:[#allocation5 + $0xd8] sm:$0xff]
    %v89 = vld [vmem:[#allocation5 + $0xe0] sm:$0xff]
    %v90 = vld [vmem:[#allocation5 + $0xe8] sm:$0xff]
    %v91 = vld [vmem:[#allocation5 + $0xf0] sm:$0xff]
    %v92 = vld [vmem:[#allocation5 + $0xf8] sm:$0xff]
    %v93 = vld [vmem:[#allocation7] sm:$0xff]
    %v94 = vld [vmem:[#allocation7 + $0x8] sm:$0xff]
    %v95 = vld [vmem:[#allocation7 + $0x10] sm:$0xff]
    %v96 = vld [vmem:[#allocation7 + $0x18] sm:$0xff]
    %v97 = vld [vmem:[#allocation7 + $0x20] sm:$0xff]
    %v98 = vld [vmem:[#allocation7 + $0x28] sm:$0xff]
    %v99 = vld [vmem:[#allocation7 + $0x30] sm:$0xff]
    %v100 = vld [vmem:[#allocation7 + $0x38] sm:$0xff]
    %v101 = vld [vmem:[#allocation7 + $0x40] sm:$0xff]
    %v102 = vld [vmem:[#allocation7 + $0x48] sm:$0xff]
    %v103 = vld [vmem:[#allocation7 + $0x50] sm:$0xff]
    %v104 = vld [vmem:[#allocation7 + $0x58] sm:$0xff]
    %v105 = vld [vmem:[#allocation7 + $0x60] sm:$0xff]
    %v106 = vld [vmem:[#allocation7 + $0x68] sm:$0xff]
    %v107 = vld [vmem:[#allocation7 + $0x70] sm:$0xff]
    %v108 = vld [vmem:[#allocation7 + $0x78] sm:$0xff]
    %v109 = vld [vmem:[#allocation7 + $0x80] sm:$0xff]
    %v110 = vld [vmem:[#allocation7 + $0x88] sm:$0xff]
    %v111 = vld [vmem:[#allocation7 + $0x90] sm:$0xff]
    %v112 = vld [vmem:[#allocation7 + $0x98] sm:$0xff]
    %v113 = vld [vmem:[#allocation7 + $0xa0] sm:$0xff]
    %v114 = vld [vmem:[#allocation7 + $0xa8] sm:$0xff]
    %v115 = vld [vmem:[#allocation7 + $0xb0] sm:$0xff]
    %v116 = vld [vmem:[#allocation7 + $0xb8] sm:$0xff]
    %v117 = vld [vmem:[#allocation7 + $0xc0] sm:$0xff]
    %v118 = vld [vmem:[#allocation7 + $0xc8] sm:$0xff]
    %v119 = vld [vmem:[#allocation7 + $0xd0] sm:$0xff]
    %v120 = vld [vmem:[#allocation7 + $0xd8] sm:$0xff]
    %v121 = vld [vmem:[#allocation7 + $0xe0] sm:$0xff]
    %v122 = vld [vmem:[#allocation7 + $0xe8] sm:$0xff]
    %v123 = vld [vmem:[#allocation7 + $0xf0] sm:$0xff]
    %v124 = vld [vmem:[#allocation7 + $0xf8] sm:$0xff]
    %v125 = vld [vmem:[#allocation7 + $0x100] sm:$0xff]
    %v126 = vld [vmem:[#allocation7 + $0x108] sm:$0xff]
    %v127 = vld [vmem:[#allocation7 + $0x110] sm:$0xff]
    %v128 = vld [vmem:[#allocation7 + $0x118] sm:$0xff]
    %v129 = vld [vmem:[#allocation7 + $0x120] sm:$0xff]
    %v130 = vld [vmem:[#allocation7 + $0x128] sm:$0xff]
    %v131 = vld [vmem:[#allocation7 + $0x130] sm:$0xff]
    %v132 = vld [vmem:[#allocation7 + $0x138] sm:$0xff]
    %v133 = vld [vmem:[#allocation7 + $0x140] sm:$0xff]
    %v134 = vld [vmem:[#allocation7 + $0x148] sm:$0xff]
    %v135 = vld [vmem:[#allocation7 + $0x150] sm:$0xff]
    %v136 = vld [vmem:[#allocation7 + $0x158] sm:$0xff]
    %v137 = vld [vmem:[#allocation7 + $0x160] sm:$0xff]
    %v138 = vld [vmem:[#allocation7 + $0x168] sm:$0xff]
    %v139 = vld [vmem:[#allocation7 + $0x170] sm:$0xff]
    %v140 = vld [vmem:[#allocation7 + $0x178] sm:$0xff]
    %v141 = vld [vmem:[#allocation7 + $0x180] sm:$0xff]
    %v142 = vld [vmem:[#allocation7 + $0x188] sm:$0xff]
    %v143 = vld [vmem:[#allocation7 + $0x190] sm:$0xff]
    %v144 = vld [vmem:[#allocation7 + $0x198] sm:$0xff]
    %v145 = vld [vmem:[#allocation7 + $0x1a0] sm:$0xff]
    %v146 = vld [vmem:[#allocation7 + $0x1a8] sm:$0xff]
    %v147 = vld [vmem:[#allocation7 + $0x1b0] sm:$0xff]
    %v148 = vld [vmem:[#allocation7 + $0x1b8] sm:$0xff]
    %v149 = vld [vmem:[#allocation7 + $0x1c0] sm:$0xff]
    %v150 = vld [vmem:[#allocation7 + $0x1c8] sm:$0xff]
    %v151 = vld [vmem:[#allocation7 + $0x1d0] sm:$0xff]
    %v152 = vld [vmem:[#allocation7 + $0x1d8] sm:$0xff]
    %v153 = vld [vmem:[#allocation7 + $0x1e0] sm:$0xff]
    %v154 = vld [vmem:[#allocation7 + $0x1e8] sm:$0xff]
    %v155 = vld [vmem:[#allocation7 + $0x1f0] sm:$0xff]
    %v156 = vld [vmem:[#allocation7 + $0x1f8] sm:$0xff]
    %v159 = vlaneseq
    %v160 = vshrl.u32 %v159, 7
    %v161 = vsub.s32 0, %v160
    %v162 = vrot.slane %v59, %v161
    %v163 = vlaneseq
    %v164 = vshrl.u32 %v163, 7
    %v165 = vsub.s32 4, %v164
    %v166 = vrot.slane %v59, %v165
    %v167 = vlaneseq
    %v168 = vshrl.u32 %v167, 7
    %v169 = vsub.s32 0, %v168
    %v170 = vrot.slane %v60, %v169
    %v171 = vlaneseq
    %v172 = vshrl.u32 %v171, 7
    %v173 = vsub.s32 4, %v172
    %v174 = vrot.slane %v60, %v173
    %vm175 = vcmask 1041409
    %v176 = vsel %vm175, %v170, %v162
    %v177 = vsel %vm175, %v174, %v166
    %180 = vmatprep.subr.mxu0 0.0
    %181 = vmatpush1.msra.mxu0 %v61
    %182 = vmatprep.subr.mxu0 0.0
    %183 = vmatpush1.msra.mxu0 %v62
    %184 = vmatprep.subr.mxu0 0.0
    %185 = vmatpush1.msra.mxu0 %v63
    %186 = vmatprep.subr.mxu0 0.0
    %187 = vmatpush1.msra.mxu0 %v64
    %188 = vmatprep.subr.mxu0 0.0
    %189 = vmatpush1.msra.mxu0 %v65
    %190 = vmatprep.subr.mxu0 0.0
    %191 = vmatpush1.msra.mxu0 %v66
    %192 = vmatprep.subr.mxu0 0.0
    %193 = vmatpush1.msra.mxu0 %v67
    %194 = vmatprep.subr.mxu0 0.0
    %195 = vmatpush1.msra.mxu0 %v68
    %196 = vmatprep.subr.mxu0 0.0
    %197 = vmatpush1.msra.mxu0 %v69
    %198 = vmatprep.subr.mxu0 0.0
    %199 = vmatpush1.msra.mxu0 %v70
    %200 = vmatprep.subr.mxu0 0.0
    %201 = vmatpush1.msra.mxu0 %v71
    %202 = vmatprep.subr.mxu0 0.0
    %203 = vmatpush1.msra.mxu0 %v72
    %204 = vmatprep.subr.mxu0 0.0
    %205 = vmatpush1.msra.mxu0 %v73
    %206 = vmatprep.subr.mxu0 0.0
    %207 = vmatpush1.msra.mxu0 %v74
    %208 = vmatprep.subr.mxu0 0.0
    %209 = vmatpush1.msra.mxu0 %v75
    %210 = vmatprep.subr.mxu0 0.0
    %211 = vmatpush1.msra.mxu0 %v76
    %212 = vmatprep.subr.mxu0 0.0
    %213 = vmatpush1.msra.mxu0 %v77
    %214 = vmatprep.subr.mxu0 0.0
    %215 = vmatpush1.msra.mxu0 %v78
    %216 = vmatprep.subr.mxu0 0.0
    %217 = vmatpush1.msra.mxu0 %v79
    %218 = vmatprep.subr.mxu0 0.0
    %219 = vmatpush1.msra.mxu0 %v80
    %220 = vmatprep.subr.mxu0 0.0
    %221 = vmatpush1.msra.mxu0 %v81
    %222 = vmatprep.subr.mxu0 0.0
    %223 = vmatpush1.msra.mxu0 %v82
    %224 = vmatprep.subr.mxu0 0.0
    %225 = vmatpush1.msra.mxu0 %v83
    %226 = vmatprep.subr.mxu0 0.0
    %227 = vmatpush1.msra.mxu0 %v84
    %228 = vmatprep.subr.mxu0 0.0
    %229 = vmatpush1.msra.mxu0 %v85
    %230 = vmatprep.subr.mxu0 0.0
    %231 = vmatpush1.msra.mxu0 %v86
    %232 = vmatprep.subr.mxu0 0.0
    %233 = vmatpush1.msra.mxu0 %v87
    %234 = vmatprep.subr.mxu0 0.0
    %235 = vmatpush1.msra.mxu0 %v88
    %236 = vmatprep.subr.mxu0 0.0
    %237 = vmatpush1.msra.mxu0 %v89
    %238 = vmatprep.subr.mxu0 0.0
    %239 = vmatpush1.msra.mxu0 %v90
    %240 = vmatprep.subr.mxu0 0.0
    %241 = vmatpush1.msra.mxu0 %v91
    %242 = vmatprep.subr.mxu0 0.0
    %243 = vmatpush1.msra.mxu0 %v92
    %244 = vmatprep.mubr.f32.mxu0 %v177
    %245 = vmatmul.mubr.f32.gmra.mrb[0].mxu0 %v176
    %v246 = vpop.f32.mrb[0].mxu0
    %v247 = vadd.f32 0.0, %v246
    %v248 = vpop.f32.mrb[0].mxu0
    %249 = vdwg.mxu0
    %v250 = vlaneseq
    %v251 = vshrl.u32 %v250, 7
    %v252 = vsub.s32 1, %v251
    %v253 = vrot.slane %v59, %v252
    %v254 = vlaneseq
    %v255 = vshrl.u32 %v254, 7
    %v256 = vsub.s32 5, %v255
    %v257 = vrot.slane %v59, %v256
    %v258 = vlaneseq
    %v259 = vshrl.u32 %v258, 7
    %v260 = vsub.s32 1, %v259
    %v261 = vrot.slane %v60, %v260
    %v262 = vlaneseq
    %v263 = vshrl.u32 %v262, 7
    %v264 = vsub.s32 5, %v263
    %v265 = vrot.slane %v60, %v264
    %v266 = vsel %vm175, %v261, %v253
    %v267 = vsel %vm175, %v265, %v257
    %270 = vmatprep.subr.mxu0 0.0
    %271 = vmatpush1.msra.mxu0 %v61
    %272 = vmatprep.subr.mxu0 0.0
    %273 = vmatpush1.msra.mxu0 %v62
    %274 = vmatprep.subr.mxu0 0.0
    %275 = vmatpush1.msra.mxu0 %v63
    %276 = vmatprep.subr.mxu0 0.0
    %277 = vmatpush1.msra.mxu0 %v64
    %278 = vmatprep.subr.mxu0 0.0
    %279 = vmatpush1.msra.mxu0 %v65
    %280 = vmatprep.subr.mxu0 0.0
    %281 = vmatpush1.msra.mxu0 %v66
    %282 = vmatprep.subr.mxu0 0.0
    %283 = vmatpush1.msra.mxu0 %v67
    %284 = vmatprep.subr.mxu0 0.0
    %285 = vmatpush1.msra.mxu0 %v68
    %286 = vmatprep.subr.mxu0 0.0
    %287 = vmatpush1.msra.mxu0 %v69
    %288 = vmatprep.subr.mxu0 0.0
    %289 = vmatpush1.msra.mxu0 %v70
    %290 = vmatprep.subr.mxu0 0.0
    %291 = vmatpush1.msra.mxu0 %v71
    %292 = vmatprep.subr.mxu0 0.0
    %293 = vmatpush1.msra.mxu0 %v72
    %294 = vmatprep.subr.mxu0 0.0
    %295 = vmatpush1.msra.mxu0 %v73
    %296 = vmatprep.subr.mxu0 0.0
    %297 = vmatpush1.msra.mxu0 %v74
    %298 = vmatprep.subr.mxu0 0.0
    %299 = vmatpush1.msra.mxu0 %v75
    %300 = vmatprep.subr.mxu0 0.0
    %301 = vmatpush1.msra.mxu0 %v76
    %302 = vmatprep.subr.mxu0 0.0
    %303 = vmatpush1.msra.mxu0 %v77
    %304 = vmatprep.subr.mxu0 0.0
    %305 = vmatpush1.msra.mxu0 %v78
    %306 = vmatprep.subr.mxu0 0.0
    %307 = vmatpush1.msra.mxu0 %v79
    %308 = vmatprep.subr.mxu0 0.0
    %309 = vmatpush1.msra.mxu0 %v80
    %310 = vmatprep.subr.mxu0 0.0
    %311 = vmatpush1.msra.mxu0 %v81
    %312 = vmatprep.subr.mxu0 0.0
    %313 = vmatpush1.msra.mxu0 %v82
    %314 = vmatprep.subr.mxu0 0.0
    %315 = vmatpush1.msra.mxu0 %v83
    %316 = vmatprep.subr.mxu0 0.0
    %317 = vmatpush1.msra.mxu0 %v84
    %318 = vmatprep.subr.mxu0 0.0
    %319 = vmatpush1.msra.mxu0 %v85
    %320 = vmatprep.subr.mxu0 0.0
    %321 = vmatpush1.msra.mxu0 %v86
    %322 = vmatprep.subr.mxu0 0.0
    %323 = vmatpush1.msra.mxu0 %v87
    %324 = vmatprep.subr.mxu0 0.0
    %325 = vmatpush1.msra.mxu0 %v88
    %326 = vmatprep.subr.mxu0 0.0
    %327 = vmatpush1.msra.mxu0 %v89
    %328 = vmatprep.subr.mxu0 0.0
    %329 = vmatpush1.msra.mxu0 %v90
    %330 = vmatprep.subr.mxu0 0.0
    %331 = vmatpush1.msra.mxu0 %v91
    %332 = vmatprep.subr.mxu0 0.0
    %333 = vmatpush1.msra.mxu0 %v92
    %334 = vmatprep.mubr.f32.mxu0 %v267
    %335 = vmatmul.mubr.f32.gmra.mrb[0].mxu0 %v266
    %v336 = vpop.f32.mrb[0].mxu0
    %v337 = vadd.f32 0.0, %v336
    %v338 = vpop.f32.mrb[0].mxu0
    %339 = vdwg.mxu0
    %340 = vmatprep.subr.mxu0 0.0
    %341 = vmatpush1.msra.mxu0 %v109
    %342 = vmatprep.subr.mxu0 0.0
    %343 = vmatpush1.msra.mxu0 %v110
    %344 = vmatprep.subr.mxu0 0.0
    %345 = vmatpush1.msra.mxu0 %v111
    %346 = vmatprep.subr.mxu0 0.0
    %347 = vmatpush1.msra.mxu0 %v112
    %348 = vmatprep.subr.mxu0 0.0
    %349 = vmatpush1.msra.mxu0 %v113
    %350 = vmatprep.subr.mxu0 0.0
    %351 = vmatpush1.msra.mxu0 %v114
    %352 = vmatprep.subr.mxu0 0.0
    %353 = vmatpush1.msra.mxu0 %v115
    %354 = vmatprep.subr.mxu0 0.0
    %355 = vmatpush1.msra.mxu0 %v116
    %356 = vmatprep.subr.mxu0 0.0
    %357 = vmatpush1.msra.mxu0 %v117
    %358 = vmatprep.subr.mxu0 0.0
    %359 = vmatpush1.msra.mxu0 %v118
    %360 = vmatprep.subr.mxu0 0.0
    %361 = vmatpush1.msra.mxu0 %v119
    %362 = vmatprep.subr.mxu0 0.0
    %363 = vmatpush1.msra.mxu0 %v120
    %364 = vmatprep.subr.mxu0 0.0
    %365 = vmatpush1.msra.mxu0 %v121
    %366 = vmatprep.subr.mxu0 0.0
    %367 = vmatpush1.msra.mxu0 %v122
    %368 = vmatprep.subr.mxu0 0.0
    %369 = vmatpush1.msra.mxu0 %v123
    %370 = vmatprep.subr.mxu0 0.0
    %371 = vmatpush1.msra.mxu0 %v124
    %372 = vmatprep.subr.mxu0 0.0
    %373 = vmatpush1.msra.mxu0 0.0
    %374 = vmatprep.subr.mxu0 0.0
    %375 = vmatpush1.msra.mxu0 0.0
    %376 = vmatprep.subr.mxu0 0.0
    %377 = vmatpush1.msra.mxu0 0.0
    %378 = vmatprep.subr.mxu0 0.0
    %379 = vmatpush1.msra.mxu0 0.0
    %380 = vmatprep.subr.mxu0 0.0
    %381 = vmatpush1.msra.mxu0 0.0
    %382 = vmatprep.subr.mxu0 0.0
    %383 = vmatpush1.msra.mxu0 0.0
    %384 = vmatprep.subr.mxu0 0.0
    %385 = vmatpush1.msra.mxu0 0.0
    %386 = vmatprep.subr.mxu0 0.0
    %387 = vmatpush1.msra.mxu0 0.0
    %388 = vmatprep.subr.mxu0 0.0
    %389 = vmatpush1.msra.mxu0 0.0
    %390 = vmatprep.subr.mxu0 0.0
    %391 = vmatpush1.msra.mxu0 0.0
    %392 = vmatprep.subr.mxu0 0.0
    %393 = vmatpush1.msra.mxu0 0.0
    %394 = vmatprep.subr.mxu0 0.0
    %395 = vmatpush1.msra.mxu0 0.0
    %396 = vmatprep.subr.mxu0 0.0
    %397 = vmatpush1.msra.mxu0 0.0
    %398 = vmatprep.subr.mxu0 0.0
    %399 = vmatpush1.msra.mxu0 0.0
    %400 = vmatprep.subr.mxu0 0.0
    %401 = vmatpush1.msra.mxu0 0.0
    %402 = vmatprep.subr.mxu0 0.0
    %403 = vmatpush1.msra.mxu0 0.0
    %404 = vmatprep.mubr.f32.mxu0 0.0
    %405 = vmatmul.mubr.f32.gmra.mrb[0].mxu0 %v337
    %v406 = vpop.f32.mrb[0].mxu0
    %v407 = vadd.f32 0.0, %v406
    %v408 = vpop.f32.mrb[0].mxu0
    %409 = vdwg.mxu0
    %410 = vmatprep.subr.mxu0 0.0
    %411 = vmatpush1.msra.mxu0 %v93
    %412 = vmatprep.subr.mxu0 0.0
    %413 = vmatpush1.msra.mxu0 %v94
    %414 = vmatprep.subr.mxu0 0.0
    %415 = vmatpush1.msra.mxu0 %v95
    %416 = vmatprep.subr.mxu0 0.0
    %417 = vmatpush1.msra.mxu0 %v96
    %418 = vmatprep.subr.mxu0 0.0
    %419 = vmatpush1.msra.mxu0 %v97
    %420 = vmatprep.subr.mxu0 0.0
    %421 = vmatpush1.msra.mxu0 %v98
    %422 = vmatprep.subr.mxu0 0.0
    %423 = vmatpush1.msra.mxu0 %v99
    %424 = vmatprep.subr.mxu0 0.0
    %425 = vmatpush1.msra.mxu0 %v100
    %426 = vmatprep.subr.mxu0 0.0
    %427 = vmatpush1.msra.mxu0 %v101
    %428 = vmatprep.subr.mxu0 0.0
    %429 = vmatpush1.msra.mxu0 %v102
    %430 = vmatprep.subr.mxu0 0.0
    %431 = vmatpush1.msra.mxu0 %v103
    %432 = vmatprep.subr.mxu0 0.0
    %433 = vmatpush1.msra.mxu0 %v104
    %434 = vmatprep.subr.mxu0 0.0
    %435 = vmatpush1.msra.mxu0 %v105
    %436 = vmatprep.subr.mxu0 0.0
    %437 = vmatpush1.msra.mxu0 %v106
    %438 = vmatprep.subr.mxu0 0.0
    %439 = vmatpush1.msra.mxu0 %v107
    %440 = vmatprep.subr.mxu0 0.0
    %441 = vmatpush1.msra.mxu0 %v108
    %442 = vmatprep.subr.mxu0 0.0
    %443 = vmatpush1.msra.mxu0 0.0
    %444 = vmatprep.subr.mxu0 0.0
    %445 = vmatpush1.msra.mxu0 0.0
    %446 = vmatprep.subr.mxu0 0.0
    %447 = vmatpush1.msra.mxu0 0.0
    %448 = vmatprep.subr.mxu0 0.0
    %449 = vmatpush1.msra.mxu0 0.0
    %450 = vmatprep.subr.mxu0 0.0
    %451 = vmatpush1.msra.mxu0 0.0
    %452 = vmatprep.subr.mxu0 0.0
    %453 = vmatpush1.msra.mxu0 0.0
    %454 = vmatprep.subr.mxu0 0.0
    %455 = vmatpush1.msra.mxu0 0.0
    %456 = vmatprep.subr.mxu0 0.0
    %457 = vmatpush1.msra.mxu0 0.0
    %458 = vmatprep.subr.mxu0 0.0
    %459 = vmatpush1.msra.mxu0 0.0
    %460 = vmatprep.subr.mxu0 0.0
    %461 = vmatpush1.msra.mxu0 0.0
    %462 = vmatprep.subr.mxu0 0.0
    %463 = vmatpush1.msra.mxu0 0.0
    %464 = vmatprep.subr.mxu0 0.0
    %465 = vmatpush1.msra.mxu0 0.0
    %466 = vmatprep.subr.mxu0 0.0
    %467 = vmatpush1.msra.mxu0 0.0
    %468 = vmatprep.subr.mxu0 0.0
    %469 = vmatpush1.msra.mxu0 0.0
    %470 = vmatprep.subr.mxu0 0.0
    %471 = vmatpush1.msra.mxu0 0.0
    %472 = vmatprep.subr.mxu0 0.0
    %473 = vmatpush1.msra.mxu0 0.0
    %474 = vmatprep.mubr.f32.mxu0 0.0
    %475 = vmatmul.mubr.f32.gmra.mrb[0].mxu0 %v247
    %v476 = vpop.f32.mrb[0].mxu0
    %v477 = vadd.f32 %v407, %v476
    %v478 = vpop.f32.mrb[0].mxu0
    %479 = vdwg.mxu0
    %v480 = vlaneseq
    %v481 = vshrl.u32 %v480, 7
    %v482 = vsub.s32 2, %v481
    %v483 = vrot.slane %v59, %v482
    %v484 = vlaneseq
    %v485 = vshrl.u32 %v484, 7
    %v486 = vsub.s32 6, %v485
    %v487 = vrot.slane %v59, %v486
    %v488 = vlaneseq
    %v489 = vshrl.u32 %v488, 7
    %v490 = vsub.s32 2, %v489
    %v491 = vrot.slane %v60, %v490
    %v492 = vlaneseq
    %v493 = vshrl.u32 %v492, 7
    %v494 = vsub.s32 6, %v493
    %v495 = vrot.slane %v60, %v494
    %v496 = vsel %vm175, %v491, %v483
    %v497 = vsel %vm175, %v495, %v487
    %500 = vmatprep.subr.mxu0 0.0
    %501 = vmatpush1.msra.mxu0 %v61
    %502 = vmatprep.subr.mxu0 0.0
    %503 = vmatpush1.msra.mxu0 %v62
    %504 = vmatprep.subr.mxu0 0.0
    %505 = vmatpush1.msra.mxu0 %v63
    %506 = vmatprep.subr.mxu0 0.0
    %507 = vmatpush1.msra.mxu0 %v64
    %508 = vmatprep.subr.mxu0 0.0
    %509 = vmatpush1.msra.mxu0 %v65
    %510 = vmatprep.subr.mxu0 0.0
    %511 = vmatpush1.msra.mxu0 %v66
    %512 = vmatprep.subr.mxu0 0.0
    %513 = vmatpush1.msra.mxu0 %v67
    %514 = vmatprep.subr.mxu0 0.0
    %515 = vmatpush1.msra.mxu0 %v68
    %516 = vmatprep.subr.mxu0 0.0
    %517 = vmatpush1.msra.mxu0 %v69
    %518 = vmatprep.subr.mxu0 0.0
    %519 = vmatpush1.msra.mxu0 %v70
    %520 = vmatprep.subr.mxu0 0.0
    %521 = vmatpush1.msra.mxu0 %v71
    %522 = vmatprep.subr.mxu0 0.0
    %523 = vmatpush1.msra.mxu0 %v72
    %524 = vmatprep.subr.mxu0 0.0
    %525 = vmatpush1.msra.mxu0 %v73
    %526 = vmatprep.subr.mxu0 0.0
    %527 = vmatpush1.msra.mxu0 %v74
    %528 = vmatprep.subr.mxu0 0.0
    %529 = vmatpush1.msra.mxu0 %v75
    %530 = vmatprep.subr.mxu0 0.0
    %531 = vmatpush1.msra.mxu0 %v76
    %532 = vmatprep.subr.mxu0 0.0
    %533 = vmatpush1.msra.mxu0 %v77
    %534 = vmatprep.subr.mxu0 0.0
    %535 = vmatpush1.msra.mxu0 %v78
    %536 = vmatprep.subr.mxu0 0.0
    %537 = vmatpush1.msra.mxu0 %v79
    %538 = vmatprep.subr.mxu0 0.0
    %539 = vmatpush1.msra.mxu0 %v80
    %540 = vmatprep.subr.mxu0 0.0
    %541 = vmatpush1.msra.mxu0 %v81
    %542 = vmatprep.subr.mxu0 0.0
    %543 = vmatpush1.msra.mxu0 %v82
    %544 = vmatprep.subr.mxu0 0.0
    %545 = vmatpush1.msra.mxu0 %v83
    %546 = vmatprep.subr.mxu0 0.0
    %547 = vmatpush1.msra.mxu0 %v84
    %548 = vmatprep.subr.mxu0 0.0
    %549 = vmatpush1.msra.mxu0 %v85
    %550 = vmatprep.subr.mxu0 0.0
    %551 = vmatpush1.msra.mxu0 %v86
    %552 = vmatprep.subr.mxu0 0.0
    %553 = vmatpush1.msra.mxu0 %v87
    %554 = vmatprep.subr.mxu0 0.0
    %555 = vmatpush1.msra.mxu0 %v88
    %556 = vmatprep.subr.mxu0 0.0
    %557 = vmatpush1.msra.mxu0 %v89
    %558 = vmatprep.subr.mxu0 0.0
    %559 = vmatpush1.msra.mxu0 %v90
    %560 = vmatprep.subr.mxu0 0.0
    %561 = vmatpush1.msra.mxu0 %v91
    %562 = vmatprep.subr.mxu0 0.0
    %563 = vmatpush1.msra.mxu0 %v92
    %564 = vmatprep.mubr.f32.mxu0 %v497
    %565 = vmatmul.mubr.f32.gmra.mrb[0].mxu0 %v496
    %v566 = vpop.f32.mrb[0].mxu0
    %v567 = vadd.f32 0.0, %v566
    %v568 = vpop.f32.mrb[0].mxu0
    %569 = vdwg.mxu0
    %570 = vmatprep.subr.mxu0 0.0
    %571 = vmatpush1.msra.mxu0 %v125
    %572 = vmatprep.subr.mxu0 0.0
    %573 = vmatpush1.msra.mxu0 %v126
    %574 = vmatprep.subr.mxu0 0.0
    %575 = vmatpush1.msra.mxu0 %v127
    %576 = vmatprep.subr.mxu0 0.0
    %577 = vmatpush1.msra.mxu0 %v128
    %578 = vmatprep.subr.mxu0 0.0
    %579 = vmatpush1.msra.mxu0 %v129
    %580 = vmatprep.subr.mxu0 0.0
    %581 = vmatpush1.msra.mxu0 %v130
    %582 = vmatprep.subr.mxu0 0.0
    %583 = vmatpush1.msra.mxu0 %v131
    %584 = vmatprep.subr.mxu0 0.0
    %585 = vmatpush1.msra.mxu0 %v132
    %586 = vmatprep.subr.mxu0 0.0
    %587 = vmatpush1.msra.mxu0 %v133
    %588 = vmatprep.subr.mxu0 0.0
    %589 = vmatpush1.msra.mxu0 %v134
    %590 = vmatprep.subr.mxu0 0.0
    %591 = vmatpush1.msra.mxu0 %v135
    %592 = vmatprep.subr.mxu0 0.0
    %593 = vmatpush1.msra.mxu0 %v136
    %594 = vmatprep.subr.mxu0 0.0
    %595 = vmatpush1.msra.mxu0 %v137
    %596 = vmatprep.subr.mxu0 0.0
    %597 = vmatpush1.msra.mxu0 %v138
    %598 = vmatprep.subr.mxu0 0.0
    %599 = vmatpush1.msra.mxu0 %v139
    %600 = vmatprep.subr.mxu0 0.0
    %601 = vmatpush1.msra.mxu0 %v140
    %602 = vmatprep.subr.mxu0 0.0
    %603 = vmatpush1.msra.mxu0 0.0
    %604 = vmatprep.subr.mxu0 0.0
    %605 = vmatpush1.msra.mxu0 0.0
    %606 = vmatprep.subr.mxu0 0.0
    %607 = vmatpush1.msra.mxu0 0.0
    %608 = vmatprep.subr.mxu0 0.0
    %609 = vmatpush1.msra.mxu0 0.0
    %610 = vmatprep.subr.mxu0 0.0
    %611 = vmatpush1.msra.mxu0 0.0
    %612 = vmatprep.subr.mxu0 0.0
    %613 = vmatpush1.msra.mxu0 0.0
    %614 = vmatprep.subr.mxu0 0.0
    %615 = vmatpush1.msra.mxu0 0.0
    %616 = vmatprep.subr.mxu0 0.0
    %617 = vmatpush1.msra.mxu0 0.0
    %618 = vmatprep.subr.mxu0 0.0
    %619 = vmatpush1.msra.mxu0 0.0
    %620 = vmatprep.subr.mxu0 0.0
    %621 = vmatpush1.msra.mxu0 0.0
    %622 = vmatprep.subr.mxu0 0.0
    %623 = vmatpush1.msra.mxu0 0.0
    %624 = vmatprep.subr.mxu0 0.0
    %625 = vmatpush1.msra.mxu0 0.0
    %626 = vmatprep.subr.mxu0 0.0
    %627 = vmatpush1.msra.mxu0 0.0
    %628 = vmatprep.subr.mxu0 0.0
    %629 = vmatpush1.msra.mxu0 0.0
    %630 = vmatprep.subr.mxu0 0.0
    %631 = vmatpush1.msra.mxu0 0.0
    %632 = vmatprep.subr.mxu0 0.0
    %633 = vmatpush1.msra.mxu0 0.0
    %634 = vmatprep.mubr.f32.mxu0 0.0
    %635 = vmatmul.mubr.f32.gmra.mrb[0].mxu0 %v567
    %v636 = vpop.f32.mrb[0].mxu0
    %v637 = vadd.f32 0.0, %v636
    %v638 = vpop.f32.mrb[0].mxu0
    %639 = vdwg.mxu0
    %v640 = vadd.f32 %v477, %v637
    %v641 = vlaneseq
    %v642 = vshrl.u32 %v641, 7
    %v643 = vsub.s32 3, %v642
    %v644 = vrot.slane %v59, %v643
    %v645 = vlaneseq
    %v646 = vshrl.u32 %v645, 7
    %v647 = vsub.s32 7, %v646
    %v648 = vrot.slane %v59, %v647
    %v649 = vlaneseq
    %v650 = vshrl.u32 %v649, 7
    %v651 = vsub.s32 3, %v650
    %v652 = vrot.slane %v60, %v651
    %v653 = vlaneseq
    %v654 = vshrl.u32 %v653, 7
    %v655 = vsub.s32 7, %v654
    %v656 = vrot.slane %v60, %v655
    %v657 = vsel %vm175, %v652, %v644
    %v658 = vsel %vm175, %v656, %v648
    %661 = vmatprep.subr.mxu0 0.0
    %662 = vmatpush1.msra.mxu0 %v61
    %663 = vmatprep.subr.mxu0 0.0
    %664 = vmatpush1.msra.mxu0 %v62
    %665 = vmatprep.subr.mxu0 0.0
    %666 = vmatpush1.msra.mxu0 %v63
    %667 = vmatprep.subr.mxu0 0.0
    %668 = vmatpush1.msra.mxu0 %v64
    %669 = vmatprep.subr.mxu0 0.0
    %670 = vmatpush1.msra.mxu0 %v65
    %671 = vmatprep.subr.mxu0 0.0
    %672 = vmatpush1.msra.mxu0 %v66
    %673 = vmatprep.subr.mxu0 0.0
    %674 = vmatpush1.msra.mxu0 %v67
    %675 = vmatprep.subr.mxu0 0.0
    %676 = vmatpush1.msra.mxu0 %v68
    %677 = vmatprep.subr.mxu0 0.0
    %678 = vmatpush1.msra.mxu0 %v69
    %679 = vmatprep.subr.mxu0 0.0
    %680 = vmatpush1.msra.mxu0 %v70
    %681 = vmatprep.subr.mxu0 0.0
    %682 = vmatpush1.msra.mxu0 %v71
    %683 = vmatprep.subr.mxu0 0.0
    %684 = vmatpush1.msra.mxu0 %v72
    %685 = vmatprep.subr.mxu0 0.0
    %686 = vmatpush1.msra.mxu0 %v73
    %687 = vmatprep.subr.mxu0 0.0
    %688 = vmatpush1.msra.mxu0 %v74
    %689 = vmatprep.subr.mxu0 0.0
    %690 = vmatpush1.msra.mxu0 %v75
    %691 = vmatprep.subr.mxu0 0.0
    %692 = vmatpush1.msra.mxu0 %v76
    %693 = vmatprep.subr.mxu0 0.0
    %694 = vmatpush1.msra.mxu0 %v77
    %695 = vmatprep.subr.mxu0 0.0
    %696 = vmatpush1.msra.mxu0 %v78
    %697 = vmatprep.subr.mxu0 0.0
    %698 = vmatpush1.msra.mxu0 %v79
    %699 = vmatprep.subr.mxu0 0.0
    %700 = vmatpush1.msra.mxu0 %v80
    %701 = vmatprep.subr.mxu0 0.0
    %702 = vmatpush1.msra.mxu0 %v81
    %703 = vmatprep.subr.mxu0 0.0
    %704 = vmatpush1.msra.mxu0 %v82
    %705 = vmatprep.subr.mxu0 0.0
    %706 = vmatpush1.msra.mxu0 %v83
    %707 = vmatprep.subr.mxu0 0.0
    %708 = vmatpush1.msra.mxu0 %v84
    %709 = vmatprep.subr.mxu0 0.0
    %710 = vmatpush1.msra.mxu0 %v85
    %711 = vmatprep.subr.mxu0 0.0
    %712 = vmatpush1.msra.mxu0 %v86
    %713 = vmatprep.subr.mxu0 0.0
    %714 = vmatpush1.msra.mxu0 %v87
    %715 = vmatprep.subr.mxu0 0.0
    %716 = vmatpush1.msra.mxu0 %v88
    %717 = vmatprep.subr.mxu0 0.0
    %718 = vmatpush1.msra.mxu0 %v89
    %719 = vmatprep.subr.mxu0 0.0
    %720 = vmatpush1.msra.mxu0 %v90
    %721 = vmatprep.subr.mxu0 0.0
    %722 = vmatpush1.msra.mxu0 %v91
    %723 = vmatprep.subr.mxu0 0.0
    %724 = vmatpush1.msra.mxu0 %v92
    %725 = vmatprep.mubr.f32.mxu0 %v658
    %726 = vmatmul.mubr.f32.gmra.mrb[0].mxu0 %v657
    %v727 = vpop.f32.mrb[0].mxu0
    %v728 = vadd.f32 0.0, %v727
    %v729 = vpop.f32.mrb[0].mxu0
    %730 = vdwg.mxu0
    %731 = vmatprep.subr.mxu0 0.0
    %732 = vmatpush1.msra.mxu0 %v141
    %733 = vmatprep.subr.mxu0 0.0
    %734 = vmatpush1.msra.mxu0 %v142
    %735 = vmatprep.subr.mxu0 0.0
    %736 = vmatpush1.msra.mxu0 %v143
    %737 = vmatprep.subr.mxu0 0.0
    %738 = vmatpush1.msra.mxu0 %v144
    %739 = vmatprep.subr.mxu0 0.0
    %740 = vmatpush1.msra.mxu0 %v145
    %741 = vmatprep.subr.mxu0 0.0
    %742 = vmatpush1.msra.mxu0 %v146
    %743 = vmatprep.subr.mxu0 0.0
    %744 = vmatpush1.msra.mxu0 %v147
    %745 = vmatprep.subr.mxu0 0.0
    %746 = vmatpush1.msra.mxu0 %v148
    %747 = vmatprep.subr.mxu0 0.0
    %748 = vmatpush1.msra.mxu0 %v149
    %749 = vmatprep.subr.mxu0 0.0
    %750 = vmatpush1.msra.mxu0 %v150
    %751 = vmatprep.subr.mxu0 0.0
    %752 = vmatpush1.msra.mxu0 %v151
    %753 = vmatprep.subr.mxu0 0.0
    %754 = vmatpush1.msra.mxu0 %v152
    %755 = vmatprep.subr.mxu0 0.0
    %756 = vmatpush1.msra.mxu0 %v153
    %757 = vmatprep.subr.mxu0 0.0
    %758 = vmatpush1.msra.mxu0 %v154
    %759 = vmatprep.subr.mxu0 0.0
    %760 = vmatpush1.msra.mxu0 %v155
    %761 = vmatprep.subr.mxu0 0.0
    %762 = vmatpush1.msra.mxu0 %v156
    %763 = vmatprep.subr.mxu0 0.0
    %764 = vmatpush1.msra.mxu0 0.0
    %765 = vmatprep.subr.mxu0 0.0
    %766 = vmatpush1.msra.mxu0 0.0
    %767 = vmatprep.subr.mxu0 0.0
    %768 = vmatpush1.msra.mxu0 0.0
    %769 = vmatprep.subr.mxu0 0.0
    %770 = vmatpush1.msra.mxu0 0.0
    %771 = vmatprep.subr.mxu0 0.0
    %772 = vmatpush1.msra.mxu0 0.0
    %773 = vmatprep.subr.mxu0 0.0
    %774 = vmatpush1.msra.mxu0 0.0
    %775 = vmatprep.subr.mxu0 0.0
    %776 = vmatpush1.msra.mxu0 0.0
    %777 = vmatprep.subr.mxu0 0.0
    %778 = vmatpush1.msra.mxu0 0.0
    %779 = vmatprep.subr.mxu0 0.0
    %780 = vmatpush1.msra.mxu0 0.0
    %781 = vmatprep.subr.mxu0 0.0
    %782 = vmatpush1.msra.mxu0 0.0
    %783 = vmatprep.subr.mxu0 0.0
    %784 = vmatpush1.msra.mxu0 0.0
    %785 = vmatprep.subr.mxu0 0.0
    %786 = vmatpush1.msra.mxu0 0.0
    %787 = vmatprep.subr.mxu0 0.0
    %788 = vmatpush1.msra.mxu0 0.0
    %789 = vmatprep.subr.mxu0 0.0
    %790 = vmatpush1.msra.mxu0 0.0
    %791 = vmatprep.subr.mxu0 0.0
    %792 = vmatpush1.msra.mxu0 0.0
    %793 = vmatprep.subr.mxu0 0.0
    %794 = vmatpush1.msra.mxu0 0.0
    %795 = vmatprep.mubr.f32.mxu0 0.0
    %796 = vmatmul.mubr.f32.gmra.mrb[0].mxu0 %v728
    %v797 = vpop.f32.mrb[0].mxu0
    %v798 = vadd.f32 0.0, %v797
    %v799 = vpop.f32.mrb[0].mxu0
    %800 = vdwg.mxu0
    %v801 = vadd.f32 %v640, %v798
    %v802 = vld [vmem:[%s3] sm:$0x1]
    %v804 = vlaneseq
    %v805 = vshrl.u32 %v804, 7
    %v806 = vsub.s32 0, %v805
    %v807 = vrot.slane %v802, %v806
    %v809 = vadd.f32 %v801, %v807
    %810 = vst [vmem:[#allocation8] sm:$0x3] %v809
    // Predicated region
    $region30: #{tpu_custom_call.1} parent=1 // pred_check
      _
    $region31: #{tpu_custom_call.1} parent=1 // pred_check_branch
      %812 = sbr.rel (0) target = $region33
    $region32: #{tpu_custom_call.1} parent=1 // pred_region
      %s814 = ssub.s32 32, 32
      %815 = vsyncadd [#allocation4], %s814
      %s817 = sshll.u32 [#allocation8], 4
      %s818 = int_to_ptr.vmem [resolvable:$true] %s817
      %820 = dma.vmem_to_hbm [thread:$0]  %s818, 32, %s4, [#allocation4]
    $region33: #{tpu_custom_call.1} parent=1 // pred_fallthru
      _
    // Predicated region
    $region34: #{tpu_custom_call.1} parent=1 // pred_check
      _
    $region35: #{tpu_custom_call.1} parent=1 // pred_check_branch
      %822 = sbr.rel (0) target = $region37
    $region36: #{tpu_custom_call.1} parent=1 // pred_region
      %823 = dma.done [#allocation4], 32
    $region37: #{tpu_custom_call.1} parent=1 // pred_fallthru
      _
    %824 = vsyncpa [#allocation3], 1
    %825 = vsyncpa [#allocation6], 1
    %826 = vsyncpa [#allocation4], 1

</llo_original>
